<compile_context>
chip_gen: v5e
topology: v5e:2x2
jax: 0.10.0
libtpu: 0.0.40
codegen_flags: <defaults>
</compile_context>

<pallas_src>
import jax
import jax.numpy as jnp
from jax.experimental import pallas as pl
from jax.experimental.pallas import tpu as pltpu


# ---- packed block-diagonal weight slab (compute dtype), (_WSLAB_ROWS, 128) ---------------
_W1_R0 = 0      # W1 block-diag: rows [0, 48)    -> [0:24,0:64]=W1,  [24:48,64:128]=W1
_W2_R0 = 48     # W2 block-diag: rows [48, 176)  -> [0:64,0:32]=W2,  [64:128,32:64]=W2
_W3_R0 = 176    # W3 block-diag: rows [176, 304) -> [0:32,0:16]=W3,  [32:64,16:32]=W3
_WSLAB_ROWS = 304   # multiple of 16 -> bf16 sublane-tile aligned (row offsets 48/176 too)
_LANES = 128

# ---- f32 tail slab (8, 128): biases + W4, never cast to bf16 -----------------------------
#   row 0: b1 tiled twice (lanes 0:64 and 64:128)
#   row 1: b2 tiled twice (lanes 0:32 and 32:64)
#   row 2: b3 tiled twice (lanes 0:16 and 16:32)
#   row 3: b4 in lanes 0:2
#   row 4: W4^T in lanes 0:16   (mask for packed row A)
#   row 5: W4^T in lanes 16:32  (mask for packed row B)
_TSLAB_ROWS = 8

_ROW_ALIGN = 16   # packed-row alignment (covers the bf16 (16,128) sublane tiling)


def _round_up(n, m):
    return ((n + m - 1) // m) * m


def pack_weight_slab(params, dtype):
    """Block-diagonal W1/W2/W3 for 2-batch-row lane packing. Padding is exactly zero."""
    slab = jnp.zeros((_WSLAB_ROWS, _LANES), jnp.float32)
    w1, w2, w3 = params["w1"], params["w2"], params["w3"]
    slab = slab.at[_W1_R0 + 0:_W1_R0 + 24, 0:64].set(w1)
    slab = slab.at[_W1_R0 + 24:_W1_R0 + 48, 64:128].set(w1)
    slab = slab.at[_W2_R0 + 0:_W2_R0 + 64, 0:32].set(w2)
    slab = slab.at[_W2_R0 + 64:_W2_R0 + 128, 32:64].set(w2)
    slab = slab.at[_W3_R0 + 0:_W3_R0 + 32, 0:16].set(w3)
    slab = slab.at[_W3_R0 + 32:_W3_R0 + 64, 16:32].set(w3)
    return slab.astype(dtype)


def pack_tail_slab(params):
    """Biases + W4 in f32 (applied in f32 inside the kernel; never rounded to bf16)."""
    t = jnp.zeros((_TSLAB_ROWS, _LANES), jnp.float32)
    t = t.at[0, 0:64].set(params["b1"][0])
    t = t.at[0, 64:128].set(params["b1"][0])
    t = t.at[1, 0:32].set(params["b2"][0])
    t = t.at[1, 32:64].set(params["b2"][0])
    t = t.at[2, 0:16].set(params["b3"][0])
    t = t.at[2, 16:32].set(params["b3"][0])
    t = t.at[3, 0:2].set(jnp.full((2,), params["b4"][0, 0], jnp.float32))
    t = t.at[4, 0:16].set(params["w4"][:, 0])
    t = t.at[5, 16:32].set(params["w4"][:, 0])
    return t


def mlp_kernel(x_ref, w_ref, t_ref, o_ref):
    x = x_ref[...]                                    # (rows, 48) compute dtype, 2 batch rows/row
    cdt = x.dtype                                     # MXU input dtype (f32 or bf16)

    # Resident block-diagonal weights (static, 16-aligned sublane slices of the slab).
    w1 = w_ref[_W1_R0:_W1_R0 + 48, :]                 # (48, 128)
    w2 = w_ref[_W2_R0:_W2_R0 + 128, :]                # (128, 128)
    w3 = w_ref[_W3_R0:_W3_R0 + 128, :]                # (128, 128)

    t = t_ref[...]                                    # (8, 128) f32
    b1 = t[0:1, :]
    b2 = t[1:2, :]
    b3 = t[2:3, :]
    b4 = t[3:4, 0:2]                                  # (1, 2)
    w4a = t[4:5, :]                                   # W4 in lanes 0:16, zeros elsewhere
    w4b = t[5:6, :]                                   # W4 in lanes 16:32, zeros elsewhere

    # All bias-add / ReLU / reduction math in f32 (v5e-safe); MXU inputs in `cdt`.
    # Padded lanes carry exact zeros end-to-end (zero weights/bias + ReLU(0)==0).
    h = jnp.dot(x, w1, preferred_element_type=jnp.float32) + b1          # lanes 0:64 | 64:128
    h = jnp.maximum(h, 0.0)
    # Dropout(0.15): eval-mode identity.
    h = jnp.dot(h.astype(cdt), w2, preferred_element_type=jnp.float32) + b2   # lanes 0:32 | 32:64
    h = jnp.maximum(h, 0.0)
    # Dropout(0.15): eval-mode identity.
    h = jnp.dot(h.astype(cdt), w3, preferred_element_type=jnp.float32) + b3   # lanes 0:16 | 16:32
    h = jnp.maximum(h, 0.0)

    # Output layer (16 -> 1) off the MXU: masked VPU multiply + lane reduce per packed row.
    oa = jnp.sum(h * w4a, axis=-1, keepdims=True)     # (rows, 1) batch row 2r
    ob = jnp.sum(h * w4b, axis=-1, keepdims=True)     # (rows, 1) batch row 2r+1
    lane = jax.lax.broadcasted_iota(jnp.int32, (h.shape[0], 2), 1)
    out = jnp.where(lane == 0, oa, ob) + b4           # (rows, 2)
    o_ref[...] = out.astype(o_ref.dtype)


def movie_model_forward(x, params, *, tile_b=8192, compute_dtype=jnp.bfloat16,
                        vmem_limit_bytes=32 * 1024 * 1024):
    """x: (B, 24) float32. Returns (B, 1) float32. Any B is supported (padded internally)."""
    B, D_in = x.shape
    assert D_in == 24, "MovieModel expects 24 input features"

    # Packed rows: 2 batch rows per kernel row, 16-row aligned.
    rows_needed = _round_up(pl.cdiv(B, 2), _ROW_ALIGN)
    tb_rows = min(max(int(tile_b) // 2, _ROW_ALIGN), rows_needed)
    tb_rows = _round_up(tb_rows, _ROW_ALIGN)
    # v7x has 2 TensorCores: keep >= 2 grid steps (sharded over the "parallel" axis)
    # whenever the batch spans at least two minimal tiles.
    half = _round_up(pl.cdiv(rows_needed, 2), _ROW_ALIGN)
    if rows_needed >= 2 * _ROW_ALIGN and tb_rows > half:
        tb_rows = half
    # Balance tiles to minimize zero-padding.
    n_tiles = pl.cdiv(rows_needed, tb_rows)
    tb_rows = _round_up(pl.cdiv(rows_needed, n_tiles), _ROW_ALIGN)
    rows_p = tb_rows * n_tiles

    Bp = rows_p * 2
    if Bp != B:
        x = jnp.pad(x, ((0, Bp - B), (0, 0)))
    # Free in HBM (row-major): two consecutive batch rows become one 48-feature packed row.
    x2 = x.reshape(rows_p, 2 * D_in).astype(compute_dtype)

    wslab = pack_weight_slab(params, compute_dtype)   # MXU-input dtype
    tslab = pack_tail_slab(params)                    # always f32

    out2 = pl.pallas_call(
        mlp_kernel,
        out_shape=jax.ShapeDtypeStruct((rows_p, 2), jnp.float32),
        grid_spec=pltpu.PrefetchScalarGridSpec(
            num_scalar_prefetch=0,
            grid=(n_tiles,),
            in_specs=[
                pl.BlockSpec((tb_rows, 2 * D_in), lambda i: (i, 0)),        # packed x tile
                pl.BlockSpec((_WSLAB_ROWS, _LANES), lambda i: (0, 0)),      # resident weights
                pl.BlockSpec((_TSLAB_ROWS, _LANES), lambda i: (0, 0)),      # resident f32 tail
            ],
            out_specs=pl.BlockSpec((tb_rows, 2), lambda i: (i, 0)),
        ),
        compiler_params=pltpu.CompilerParams(
            dimension_semantics=("parallel",),
            vmem_limit_bytes=vmem_limit_bytes),
    )(x2, wslab, tslab)

    # (rows_p, 2) -> (Bp, 1) is a free, contiguous reshape; slice away the padding.
    return out2.reshape(Bp, 1)[:B]


def init_params(key):
    """Deterministic init mimicking nn.Linear default (uniform +-1/sqrt(fan_in))."""
    sizes = [(24, 64), (64, 32), (32, 16), (16, 1)]
    params = {}
    for idx, (fan_in, fan_out) in enumerate(sizes, start=1):
        key, kw, kb = jax.random.split(key, 3)
        bound = 1.0 / jnp.sqrt(float(fan_in))
        params[f"w{idx}"] = jax.random.uniform(
            kw, (fan_in, fan_out), jnp.float32, -bound, bound)
        params[f"b{idx}"] = jax.random.uniform(
            kb, (1, fan_out), jnp.float32, -bound, bound)
    return params


def reference_forward(x, params):
    h = jnp.maximum(x @ params["w1"] + params["b1"], 0.0)
    h = jnp.maximum(h @ params["w2"] + params["b2"], 0.0)
    h = jnp.maximum(h @ params["w3"] + params["b3"], 0.0)
    return h @ params["w4"] + params["b4"]


if __name__ == "__main__":
    key = jax.random.PRNGKey(0)
    key, kx = jax.random.split(key)
    batch = 51   # odd, non-16-aligned: exercises padding, 2-row packing and the 2-tile grid
    x = jax.random.normal(kx, (batch, 24), jnp.float32)

    params = init_params(key)
    ref = reference_forward(x, params)

    # f32 stream: exact semantics of the PyTorch module in eval mode.
    out_f32 = jax.block_until_ready(
        movie_model_forward(x, params, compute_dtype=jnp.float32))
    assert out_f32.shape == (batch, 1)
    assert jnp.allclose(out_f32, ref, atol=1e-4, rtol=1e-4), "f32 kernel mismatch vs reference"

    # Default bf16 MXU-input stream (f32 accumulation / bias / ReLU / tail).
    out = jax.block_until_ready(movie_model_forward(x, params))
    assert out.shape == (batch, 1)
    assert jnp.allclose(out, ref, atol=1e-1, rtol=1e-1), "bf16 kernel diverged from reference"

    print("KERNEL_OK")
</pallas_src>

<mosaic_0001>
module attributes {stable_mosaic.version = 11 : i64} {
  func.func @mlp_kernel(%arg0: i32, %arg1: memref<16x48xf32, #tpu.memory_space<vmem>>, %arg2: memref<304x128xf32, #tpu.memory_space<vmem>>, %arg3: memref<8x128xf32, #tpu.memory_space<vmem>>, %arg4: memref<16x2xf32, #tpu.memory_space<vmem>>) attributes {dimension_semantics = [#tpu.dimension_semantics<parallel>], iteration_bounds = array<i64: 2>, scalar_prefetch = 0 : i64, scratch_operands = 0 : i64, tpu.core_type = #tpu.core_type<tc>, window_params = [{transform_indices = @transform_0, window_bounds = array<i64: 16, 48>}, {pipeline_mode = #tpu.pipeline_mode<synchronous>, transform_indices = @transform_1, window_bounds = array<i64: 304, 128>}, {pipeline_mode = #tpu.pipeline_mode<synchronous>, transform_indices = @transform_2, window_bounds = array<i64: 8, 128>}, {transform_indices = @transform_3, window_bounds = array<i64: 16, 2>}]} {
    %c0 = arith.constant 0 : index
    %c0_0 = arith.constant 0 : index
    %0 = vector.load %arg1[%c0, %c0_0] : memref<16x48xf32, #tpu.memory_space<vmem>>, vector<16x48xf32>
    %c0_1 = arith.constant 0 : index
    %c0_2 = arith.constant 0 : index
    %1 = vector.load %arg2[%c0_1, %c0_2] : memref<304x128xf32, #tpu.memory_space<vmem>>, vector<48x128xf32>
    %c48 = arith.constant 48 : index
    %c0_3 = arith.constant 0 : index
    %2 = vector.load %arg2[%c48, %c0_3] : memref<304x128xf32, #tpu.memory_space<vmem>>, vector<128x128xf32>
    %c176 = arith.constant 176 : index
    %c0_4 = arith.constant 0 : index
    %3 = vector.load %arg2[%c176, %c0_4] : memref<304x128xf32, #tpu.memory_space<vmem>>, vector<128x128xf32>
    %c0_5 = arith.constant 0 : index
    %c0_6 = arith.constant 0 : index
    %4 = vector.load %arg3[%c0_5, %c0_6] : memref<8x128xf32, #tpu.memory_space<vmem>>, vector<8x128xf32>
    %5 = vector.extract_strided_slice %4 {offsets = [0, 0], sizes = [1, 128], strides = [1, 1]} : vector<8x128xf32> to vector<1x128xf32>
    %6 = vector.extract_strided_slice %4 {offsets = [1, 0], sizes = [1, 128], strides = [1, 1]} : vector<8x128xf32> to vector<1x128xf32>
    %7 = vector.extract_strided_slice %4 {offsets = [2, 0], sizes = [1, 128], strides = [1, 1]} : vector<8x128xf32> to vector<1x128xf32>
    %8 = vector.extract_strided_slice %4 {offsets = [3, 0], sizes = [1, 2], strides = [1, 1]} : vector<8x128xf32> to vector<1x2xf32>
    %9 = vector.extract_strided_slice %4 {offsets = [4, 0], sizes = [1, 128], strides = [1, 1]} : vector<8x128xf32> to vector<1x128xf32>
    %10 = vector.extract_strided_slice %4 {offsets = [5, 0], sizes = [1, 128], strides = [1, 1]} : vector<8x128xf32> to vector<1x128xf32>
    %cst = arith.constant dense<0.000000e+00> : vector<16x128xf32>
    %11 = tpu.matmul %0, %1, %cst {dimension_numbers = #tpu.dot_dimension_numbers<[1], [0], [0], [1], [0, 0, 1, 1], [], []>} : vector<16x48xf32>, vector<48x128xf32>, vector<16x128xf32> -> vector<16x128xf32>
    %12 = vector.broadcast %5 : vector<1x128xf32> to vector<16x128xf32>
    %13 = arith.addf %11, %12 : vector<16x128xf32>
    %cst_7 = arith.constant 0.000000e+00 : f32
    %14 = vector.broadcast %cst_7 : f32 to vector<16x128xf32>
    %15 = arith.maximumf %13, %14 : vector<16x128xf32>
    %cst_8 = arith.constant dense<0.000000e+00> : vector<16x128xf32>
    %16 = tpu.matmul %15, %2, %cst_8 {dimension_numbers = #tpu.dot_dimension_numbers<[1], [0], [0], [1], [0, 0, 1, 1], [], []>} : vector<16x128xf32>, vector<128x128xf32>, vector<16x128xf32> -> vector<16x128xf32>
    %17 = vector.broadcast %6 : vector<1x128xf32> to vector<16x128xf32>
    %18 = arith.addf %16, %17 : vector<16x128xf32>
    %cst_9 = arith.constant 0.000000e+00 : f32
    %19 = vector.broadcast %cst_9 : f32 to vector<16x128xf32>
    %20 = arith.maximumf %18, %19 : vector<16x128xf32>
    %cst_10 = arith.constant dense<0.000000e+00> : vector<16x128xf32>
    %21 = tpu.matmul %20, %3, %cst_10 {dimension_numbers = #tpu.dot_dimension_numbers<[1], [0], [0], [1], [0, 0, 1, 1], [], []>} : vector<16x128xf32>, vector<128x128xf32>, vector<16x128xf32> -> vector<16x128xf32>
    %22 = vector.broadcast %7 : vector<1x128xf32> to vector<16x128xf32>
    %23 = arith.addf %21, %22 : vector<16x128xf32>
    %cst_11 = arith.constant 0.000000e+00 : f32
    %24 = vector.broadcast %cst_11 : f32 to vector<16x128xf32>
    %25 = arith.maximumf %23, %24 : vector<16x128xf32>
    %26 = vector.broadcast %9 : vector<1x128xf32> to vector<16x128xf32>
    %27 = arith.mulf %25, %26 : vector<16x128xf32>
    %cst_12 = arith.constant dense<0.000000e+00> : vector<16xf32>
    %28 = vector.multi_reduction <add>, %27, %cst_12 [1] : vector<16x128xf32> to vector<16xf32>
    %29 = vector.shape_cast %28 : vector<16xf32> to vector<16x1xf32>
    %30 = vector.broadcast %10 : vector<1x128xf32> to vector<16x128xf32>
    %31 = arith.mulf %25, %30 : vector<16x128xf32>
    %cst_13 = arith.constant dense<0.000000e+00> : vector<16xf32>
    %32 = vector.multi_reduction <add>, %31, %cst_13 [1] : vector<16x128xf32> to vector<16xf32>
    %33 = vector.shape_cast %32 : vector<16xf32> to vector<16x1xf32>
    %34 = tpu.iota {dimensions = array<i32: 1>} : vector<16x2xi32>
    %c0_i32 = arith.constant 0 : i32
    %35 = vector.broadcast %c0_i32 : i32 to vector<16x2xi32>
    %36 = arith.cmpi eq, %34, %35 : vector<16x2xi32>
    %37 = vector.shape_cast %29 : vector<16x1xf32> to vector<16x1xf32>
    %38 = vector.broadcast %37 : vector<16x1xf32> to vector<16x2xf32>
    %39 = vector.shape_cast %33 : vector<16x1xf32> to vector<16x1xf32>
    %40 = vector.broadcast %39 : vector<16x1xf32> to vector<16x2xf32>
    %41 = arith.select %36, %38, %40 : vector<16x2xi1>, vector<16x2xf32>
    %42 = vector.broadcast %8 : vector<1x2xf32> to vector<16x2xf32>
    %43 = arith.addf %41, %42 : vector<16x2xf32>
    %c0_14 = arith.constant 0 : index
    %c0_15 = arith.constant 0 : index
    %44 = vector.load %arg4[%c0_14, %c0_15] : memref<16x2xf32, #tpu.memory_space<vmem>>, vector<16x2xf32>
    tpu.vector_store %arg4[%c0_14, %c0_15], %43 {strides = array<i32>} : memref<16x2xf32, #tpu.memory_space<vmem>>, vector<16x2xf32>,
    return
  }
  func.func @transform_0(%arg0: i32) -> (i32, i32) {
    %c0_i32 = arith.constant 0 : i32
    %c0_i32_0 = arith.constant 0 : i32
    return %arg0, %c0_i32 : i32, i32
  }
  func.func @transform_1(%arg0: i32) -> (i32, i32) {
    %c0_i32 = arith.constant 0 : i32
    %c0_i32_0 = arith.constant 0 : i32
    %c0_i32_1 = arith.constant 0 : i32
    return %c0_i32, %c0_i32_0 : i32, i32
  }
  func.func @transform_2(%arg0: i32) -> (i32, i32) {
    %c0_i32 = arith.constant 0 : i32
    %c0_i32_0 = arith.constant 0 : i32
    %c0_i32_1 = arith.constant 0 : i32
    return %c0_i32, %c0_i32_0 : i32, i32
  }
  func.func @transform_3(%arg0: i32) -> (i32, i32) {
    %c0_i32 = arith.constant 0 : i32
    %c0_i32_0 = arith.constant 0 : i32
    return %arg0, %c0_i32 : i32, i32
  }
}

</mosaic_0001>

<llo_original>
// kernel: tpu_custom_call.1
$region0: #{tpu_custom_call.1}
  #allocation0 [shape = 'u32[]', space=smem, size = 0x4, offset = 0x4, fixed_abs, tag = 'smem constant byte address 0x4 - core index']
  #allocation1 [shape = 'u32[72,128]{1,0:T(1,128)}', space=vmem, size = 0x9000, scoped, tag = 'internal scratch']
  %s0 = inlined_call_operand.hbm [shape: f32[32,48], index: 0, kind: input, shape index: {}]
  %s1 = inlined_call_operand.hbm [shape: f32[304,128], index: 1, kind: input, shape index: {}]
  %s2 = inlined_call_operand.hbm [shape: f32[8,128], index: 2, kind: input, shape index: {}]
  %s3 = inlined_call_operand.vmem [shape: f32[32,2], index: 3, kind: output, shape index: {}]
  %s4 = sld [smem:[#allocation0]]
  $region57: #{tpu_custom_call.1} parent=0
    _
  %s6 = ssub.s32 1, %s4
  %s7 = scalar_select 0, %s6, %s4
  $region1: #{tpu_custom_call.1} parent=0
    #allocation2 [shape = 'u8[16384]{0}', space=vmem, size = 0x4000, scoped, tag = 'input window, operand 0']
    #allocation3 [shape = 's32[2]{0}', space=sflag, size = 0x8, scoped, tag = 'scoped memory for tpu_custom_call.1']
    #allocation4 [shape = 'u8[155648]{0}', space=vmem, size = 0x26000, scoped, tag = 'input window, operand 1, single buffered']
    #allocation5 [shape = 's32[1]{0}', space=sflag, size = 0x4, scoped, tag = 'scoped memory for tpu_custom_call.1']
    #allocation6 [shape = 'u8[4096]{0}', space=vmem, size = 0x1000, scoped, tag = 'input window, operand 2, single buffered']
    %8 = vsyncpa [#allocation3], 0
    %s9 = scalar_lea.sflag [#allocation3], 1
    %10 = vsyncpa %s9, 0
    %11 = vsyncpa [#allocation5], 0
    loop: start=0, step=1, limit=4
    $region2: #{tpu_custom_call.1} parent=1 // loop_pre_header
      _
    $region3: #{tpu_custom_call.1} parent=1 // loop_header
      %s13 = sphi 0, %s17
      %p14 = scmp.ge.s32.totalorder %s13, 4
      %s23 = sphi 0, %s25
      %s26 = sphi 0, %s23
      %s27 = sphi 0, %s26
      %s43 = sphi 0, %s27
      %s47 = sphi 0, %s47
      %s49 = sphi 0, %s47
      %s50 = sphi 0, %s49
      %s64 = sphi 0, %s50
      %s68 = sphi 0, %s68
      %s70 = sphi 0, %s68
      %s71 = sphi 0, %s70
      %s85 = sphi 0, %s71
      %s91 = sphi 0, %s93
      %s94 = sphi 0, %s91
      %s95 = sphi 0, %s94
      %s111 = sphi 0, %s95
    $region4: #{tpu_custom_call.1} parent=1 // loop_header_branch
      %16 = sbr.rel (%p14) target = $region8
    $region5: #{tpu_custom_call.1} parent=1 // loop_body
      %s18 = ssub.s32 %s13, 1
      %s19 = ssub.s32 %s13, 2
      %s20 = sadd.s32 %s13, 1
      %s21 = ssub.s32 %s13, %s20
      %p22 = scmp.eq.s32.totalorder %s21, 0
      %s24 = sadd.s32 %s23, 1
      %s25 = scalar_select %p22, %s23, %s24
      %p28 = pneg %p22
      %p29 = scmp.eq.s32.totalorder %s13, 1
      %p30 = por %p28, %p29
      %p31 = scmp.ne.s32.totalorder %s23, %s26
      %p32 = scmp.eq.s32.totalorder %s13, 0
      %p33 = por %p31, %p32
      %p34 = scmp.ne.s32.totalorder %s23, %s26
      %p35 = scmp.eq.s32.totalorder %s18, 1
      %p36 = por %p34, %p35
      %p37 = scmp.ne.s32.totalorder %s26, %s27
      %p38 = scmp.eq.s32.totalorder %s18, 0
      %p39 = por %p37, %p38
      %p40 = scmp.ne.s32.totalorder %s26, %s27
      %p41 = scmp.eq.s32.totalorder %s19, 1
      %p42 = por %p40, %p41
      %p44 = scmp.ne.s32.totalorder %s27, %s43
      %p45 = scmp.eq.s32.totalorder %s19, 0
      %p46 = por %p44, %p45
      %s48 = sadd.s32 %s47, 1
      %p51 = scmp.eq.s32.totalorder %s13, 1
      %p52 = scmp.ne.s32.totalorder %s47, %s49
      %p53 = scmp.eq.s32.totalorder %s13, 0
      %p54 = por %p52, %p53
      %p55 = scmp.ne.s32.totalorder %s47, %s49
      %p56 = scmp.eq.s32.totalorder %s18, 1
      %p57 = por %p55, %p56
      %p58 = scmp.ne.s32.totalorder %s49, %s50
      %p59 = scmp.eq.s32.totalorder %s18, 0
      %p60 = por %p58, %p59
      %p61 = scmp.ne.s32.totalorder %s49, %s50
      %p62 = scmp.eq.s32.totalorder %s19, 1
      %p63 = por %p61, %p62
      %p65 = scmp.ne.s32.totalorder %s50, %s64
      %p66 = scmp.eq.s32.totalorder %s19, 0
      %p67 = por %p65, %p66
      %s69 = sadd.s32 %s68, 1
      %p72 = scmp.eq.s32.totalorder %s13, 1
      %p73 = scmp.ne.s32.totalorder %s68, %s70
      %p74 = scmp.eq.s32.totalorder %s13, 0
      %p75 = por %p73, %p74
      %p76 = scmp.ne.s32.totalorder %s68, %s70
      %p77 = scmp.eq.s32.totalorder %s18, 1
      %p78 = por %p76, %p77
      %p79 = scmp.ne.s32.totalorder %s70, %s71
      %p80 = scmp.eq.s32.totalorder %s18, 0
      %p81 = por %p79, %p80
      %p82 = scmp.ne.s32.totalorder %s70, %s71
      %p83 = scmp.eq.s32.totalorder %s19, 1
      %p84 = por %p82, %p83
      %p86 = scmp.ne.s32.totalorder %s71, %s85
      %p87 = scmp.eq.s32.totalorder %s19, 0
      %p88 = por %p86, %p87
      %s89 = ssub.s32 %s13, %s20
      %p90 = scmp.eq.s32.totalorder %s89, 0
      %s92 = sadd.s32 %s91, 1
      %s93 = scalar_select %p90, %s91, %s92
      %p96 = pneg %p90
      %p97 = scmp.eq.s32.totalorder %s13, 1
      %p98 = por %p96, %p97
      %p99 = scmp.ne.s32.totalorder %s91, %s94
      %p100 = scmp.eq.s32.totalorder %s13, 0
      %p101 = por %p99, %p100
      %p102 = scmp.ne.s32.totalorder %s91, %s94
      %p103 = scmp.eq.s32.totalorder %s18, 1
      %p104 = por %p102, %p103
      %p105 = scmp.ne.s32.totalorder %s94, %s95
      %p106 = scmp.eq.s32.totalorder %s18, 0
      %p107 = por %p105, %p106
      %p108 = scmp.ne.s32.totalorder %s94, %s95
      %p109 = scmp.eq.s32.totalorder %s19, 1
      %p110 = por %p108, %p109
      %p112 = scmp.ne.s32.totalorder %s95, %s111
      %p113 = scmp.eq.s32.totalorder %s19, 0
      %p114 = por %p112, %p113
      %p115 = scmp.le.s32.totalorder 1, %s13
      %p116 = scmp.lt.s32.totalorder %s13, 3
      %p117 = pnand %p115, %p116
      %p118 = pneg %p117
      // Predicated region
      $region9: #{tpu_custom_call.1} parent=5 // pred_check
        _
      $region10: #{tpu_custom_call.1} parent=5 // pred_check_branch
        %120 = sbr.rel (%p117) target = $region12
      $region11: #{tpu_custom_call.1} parent=5 // pred_region
        %s121 = ssub.s32 %s13, 1
        // Predicated region
        $region13: #{tpu_custom_call.1} parent=11 // pred_check
          %p122 = pneg %p60
        $region14: #{tpu_custom_call.1} parent=11 // pred_check_branch
          %124 = sbr.rel (%p122) target = $region16
        $region15: #{tpu_custom_call.1} parent=11 // pred_region
          %126 = vsyncadd [#allocation5], 0
          %s127 = sshll.u32 %s1, 4
          %s128 = int_to_ptr.hbm [resolvable:$true] %s127
          %s129 = sshll.u32 [#allocation4], 4
          %s130 = int_to_ptr.vmem [resolvable:$true] %s129
          %135 = dma.hbm_to_vmem [thread:$0]  %s128, 4864, %s130, [#allocation5], 128, 128, 8
        $region16: #{tpu_custom_call.1} parent=11 // pred_fallthru
          _
        // Predicated region
        $region17: #{tpu_custom_call.1} parent=11 // pred_check
          %p136 = pneg %p81
        $region18: #{tpu_custom_call.1} parent=11 // pred_check_branch
          %138 = sbr.rel (%p136) target = $region20
        $region19: #{tpu_custom_call.1} parent=11 // pred_region
          %140 = vsyncadd [#allocation5], 0
          %s142 = sshll.u32 %s2, 4
          %s143 = int_to_ptr.hbm [resolvable:$true] %s142
          %s144 = sshll.u32 [#allocation6], 4
          %s145 = int_to_ptr.vmem [resolvable:$true] %s144
          %147 = dma.hbm_to_vmem [thread:$0]  %s143, 128, %s145, [#allocation5]
        $region20: #{tpu_custom_call.1} parent=11 // pred_fallthru
          _
      $region12: #{tpu_custom_call.1} parent=5 // pred_fallthru
        _
      %p148 = scmp.lt.s32.totalorder %s13, 2
      // Predicated region
      $region21: #{tpu_custom_call.1} parent=5 // pred_check
        %p149 = pneg %p148
      $region22: #{tpu_custom_call.1} parent=5 // pred_check_branch
        %151 = sbr.rel (%p149) target = $region24
      $region23: #{tpu_custom_call.1} parent=5 // pred_region
        // Predicated region
        $region25: #{tpu_custom_call.1} parent=23 // pred_check
          %p152 = pneg %p33
        $region26: #{tpu_custom_call.1} parent=23 // pred_check_branch
          %154 = sbr.rel (%p152) target = $region28
        $region27: #{tpu_custom_call.1} parent=23 // pred_region
          %s155 = sand.u32 %s23, 1
          %s156 = scalar_lea.sflag [#allocation3], %s155
          %s157 = sand.u32 %s23, 1
          %s158 = smul.addr %s157, 16
          %s159 = scalar_lea.vmem [#allocation2], %s158
          %s160 = smul.u32 2, %s13
          %162 = vsyncadd %s156, 0
          %s163 = smul.addr %s160, 8
          %s164 = scalar_lea.hbm %s0, %s163
          %s165 = sshll.u32 %s164, 4
          %s166 = int_to_ptr.hbm [resolvable:$true] %s165
          %s167 = sshll.u32 %s159, 4
          %s168 = int_to_ptr.vmem [resolvable:$true] %s167
          %173 = dma.hbm_to_vmem [thread:$0]  %s166, 256, %s168, %s156, 128, 128, 8
        $region28: #{tpu_custom_call.1} parent=23 // pred_fallthru
          _
      $region24: #{tpu_custom_call.1} parent=5 // pred_fallthru
        _
      %p174 = scmp.le.s32.totalorder 1, %s13
      %p175 = scmp.lt.s32.totalorder %s13, 3
      %p176 = pnand %p174, %p175
      %p177 = pneg %p176
      // Predicated region
      $region29: #{tpu_custom_call.1} parent=5 // pred_check
        _
      $region30: #{tpu_custom_call.1} parent=5 // pred_check_branch
        %179 = sbr.rel (%p176) target = $region32
      $region31: #{tpu_custom_call.1} parent=5 // pred_region
        %s180 = ssub.s32 %s13, 1
        %s181 = sand.u32 %s26, 1
        %s182 = scalar_lea.sflag [#allocation3], %s181
        %s183 = sand.u32 %s26, 1
        %s184 = smul.addr %s183, 16
        %s185 = scalar_lea.vmem [#allocation2], %s184
        // Predicated region
        $region33: #{tpu_custom_call.1} parent=31 // pred_check
          %p186 = pneg %p39
        $region34: #{tpu_custom_call.1} parent=31 // pred_check_branch
          %188 = sbr.rel (%p186) target = $region36
        $region35: #{tpu_custom_call.1} parent=31 // pred_region
          %190 = dma.done %s182, 256
        $region36: #{tpu_custom_call.1} parent=31 // pred_fallthru
          _
        // Predicated region
        $region37: #{tpu_custom_call.1} parent=31 // pred_check
          %p191 = pneg %p60
        $region38: #{tpu_custom_call.1} parent=31 // pred_check_branch
          %193 = sbr.rel (%p191) target = $region40
        $region39: #{tpu_custom_call.1} parent=31 // pred_region
          %195 = dma.done [#allocation5], 4864
        $region40: #{tpu_custom_call.1} parent=31 // pred_fallthru
          _
        // Predicated region
        $region41: #{tpu_custom_call.1} parent=31 // pred_check
          %p196 = pneg %p81
        $region42: #{tpu_custom_call.1} parent=31 // pred_check_branch
          %198 = sbr.rel (%p196) target = $region44
        $region43: #{tpu_custom_call.1} parent=31 // pred_region
          %200 = dma.done [#allocation5], 128
        $region44: #{tpu_custom_call.1} parent=31 // pred_fallthru
          _
        %s201 = sand.u32 %s26, 1
        %s202 = scalar_lea.sflag [#allocation3], %s201
        %s203 = sand.u32 %s26, 1
        %s204 = smul.addr %s203, 16
        %s205 = scalar_lea.vmem [#allocation2], %s204
        %p206 = pneg %p39
        %p207 = pneg %p36
        %p208 = pneg %p60
        %p209 = pneg %p57
        %p210 = pneg %p81
        %p211 = pneg %p78
        %p212 = pneg %p107
        %p213 = pneg %p104
        %s214 = smul.u32 2, %s18
        %p215 = scmp.lt.s32.totalorder %s214, 3
        %s216 = scalar_select %p215, %s214, 3
        %s217 = smul.addr %s216, 8
        %s218 = scalar_lea.vmem %s3, %s217
        %s219 = smul.u32 2, %s18
        %s220 = smul.u32 2, %s18
        %p221 = scmp.lt.s32.totalorder %s220, 3
        %s222 = scalar_select %p221, %s220, 3
        %s223 = smul.addr %s222, 8
        %s224 = scalar_lea.vmem %s3, %s223
        %s225 = smul.u32 2, %s18
        %v226 = vld [vmem:[%s185] sm:$0xff]
        %v227 = vld [vmem:[%s185 + $0x8] sm:$0xff]
        %v228 = vld [vmem:[#allocation4] sm:$0xff]
        %v229 = vld [vmem:[#allocation4 + $0x8] sm:$0xff]
        %v230 = vld [vmem:[#allocation4 + $0x10] sm:$0xff]
        %v231 = vld [vmem:[#allocation4 + $0x18] sm:$0xff]
        %v232 = vld [vmem:[#allocation4 + $0x20] sm:$0xff]
        %v233 = vld [vmem:[#allocation4 + $0x28] sm:$0xff]
        %v234 = vld [vmem:[#allocation4 + $0x30] sm:$0xff]
        %v235 = vld [vmem:[#allocation4 + $0x38] sm:$0xff]
        %v236 = vld [vmem:[#allocation4 + $0x40] sm:$0xff]
        %v237 = vld [vmem:[#allocation4 + $0x48] sm:$0xff]
        %v238 = vld [vmem:[#allocation4 + $0x50] sm:$0xff]
        %v239 = vld [vmem:[#allocation4 + $0x58] sm:$0xff]
        %v240 = vld [vmem:[#allocation4 + $0x60] sm:$0xff]
        %v241 = vld [vmem:[#allocation4 + $0x68] sm:$0xff]
        %v242 = vld [vmem:[#allocation4 + $0x70] sm:$0xff]
        %v243 = vld [vmem:[#allocation4 + $0x78] sm:$0xff]
        %v244 = vld [vmem:[#allocation4 + $0x80] sm:$0xff]
        %v245 = vld [vmem:[#allocation4 + $0x88] sm:$0xff]
        %v246 = vld [vmem:[#allocation4 + $0x90] sm:$0xff]
        %v247 = vld [vmem:[#allocation4 + $0x98] sm:$0xff]
        %v248 = vld [vmem:[#allocation4 + $0xa0] sm:$0xff]
        %v249 = vld [vmem:[#allocation4 + $0xa8] sm:$0xff]
        %v250 = vld [vmem:[#allocation4 + $0xb0] sm:$0xff]
        %v251 = vld [vmem:[#allocation4 + $0xb8] sm:$0xff]
        %v252 = vld [vmem:[#allocation4 + $0xc0] sm:$0xff]
        %v253 = vld [vmem:[#allocation4 + $0xc8] sm:$0xff]
        %v254 = vld [vmem:[#allocation4 + $0xd0] sm:$0xff]
        %v255 = vld [vmem:[#allocation4 + $0xd8] sm:$0xff]
        %v256 = vld [vmem:[#allocation4 + $0xe0] sm:$0xff]
        %v257 = vld [vmem:[#allocation4 + $0xe8] sm:$0xff]
        %v258 = vld [vmem:[#allocation4 + $0xf0] sm:$0xff]
        %v259 = vld [vmem:[#allocation4 + $0xf8] sm:$0xff]
        %v260 = vld [vmem:[#allocation4 + $0x100] sm:$0xff]
        %v261 = vld [vmem:[#allocation4 + $0x108] sm:$0xff]
        %v262 = vld [vmem:[#allocation4 + $0x110] sm:$0xff]
        %v263 = vld [vmem:[#allocation4 + $0x118] sm:$0xff]
        %v264 = vld [vmem:[#allocation4 + $0x120] sm:$0xff]
        %v265 = vld [vmem:[#allocation4 + $0x128] sm:$0xff]
        %v266 = vld [vmem:[#allocation6] sm:$0xff]
        %v267 = vperm.slane %v266, 0
        %vm268 = vcmask 392192
        %v270 = vsel %vm268, %v226, 0
        %v273 = vsel %vm268, %v227, 0
        %275 = vmatpush.msra.mxu0 0.0
        %276 = vmatpush.msra.mxu0 0.0
        %277 = vmatpush.msra.mxu0 0.0
        %278 = vmatpush.msra.mxu0 0.0
        %279 = vmatpush.msra.mxu0 0.0
        %280 = vmatpush.msra.mxu0 0.0
        %281 = vmatpush.msra.mxu0 0.0
        %282 = vmatpush.msra.mxu0 0.0
        %283 = vmatpush.msra.mxu0 0.0
        %284 = vmatpush.msra.mxu0 0.0
        %285 = vmatpush.msra.mxu0 %v233
        %286 = vmatpush.msra.mxu0 %v232
        %287 = vmatpush.msra.mxu0 %v231
        %288 = vmatpush.msra.mxu0 %v230
        %289 = vmatpush.msra.mxu0 %v229
        %290 = vmatpush.msra.mxu0 %v228
        %291 = vmatmul.f32.gmra.mxu0 %v270
        %v292 = vpop.f32.mrf.mxu0
        %v293 = vadd.f32 %v267, %v292
        %294 = vmatmul.f32.gmra.mxu0 %v273
        %v295 = vpop.f32.mrf.mxu0
        %v296 = vadd.f32 %v267, %v295
        %297 = vdwg.mxu0
        %v298 = vmax.f32 %v293, 0.0
        %v299 = vmax.f32 %v296, 0.0
        %v300 = vperm.slane %v266, 1
        %301 = vmatpush.msra.mxu0 %v249
        %302 = vmatpush.msra.mxu0 %v248
        %303 = vmatpush.msra.mxu0 %v247
        %304 = vmatpush.msra.mxu0 %v246
        %305 = vmatpush.msra.mxu0 %v245
        %306 = vmatpush.msra.mxu0 %v244
        %307 = vmatpush.msra.mxu0 %v243
        %308 = vmatpush.msra.mxu0 %v242
        %309 = vmatpush.msra.mxu0 %v241
        %310 = vmatpush.msra.mxu0 %v240
        %311 = vmatpush.msra.mxu0 %v239
        %312 = vmatpush.msra.mxu0 %v238
        %313 = vmatpush.msra.mxu0 %v237
        %314 = vmatpush.msra.mxu0 %v236
        %315 = vmatpush.msra.mxu0 %v235
        %316 = vmatpush.msra.mxu0 %v234
        %317 = vmatmul.f32.gmra.mxu0 %v298
        %v318 = vpop.f32.mrf.mxu0
        %v319 = vadd.f32 %v300, %v318
        %320 = vmatmul.f32.gmra.mxu0 %v299
        %v321 = vpop.f32.mrf.mxu0
        %v322 = vadd.f32 %v300, %v321
        %323 = vdwg.mxu0
        %v324 = vmax.f32 %v319, 0.0
        %v325 = vmax.f32 %v322, 0.0
        %v326 = vperm.slane %v266, 2
        %327 = vmatpush.msra.mxu0 %v265
        %328 = vmatpush.msra.mxu0 %v264
        %329 = vmatpush.msra.mxu0 %v263
        %330 = vmatpush.msra.mxu0 %v262
        %331 = vmatpush.msra.mxu0 %v261
        %332 = vmatpush.msra.mxu0 %v260
        %333 = vmatpush.msra.mxu0 %v259
        %334 = vmatpush.msra.mxu0 %v258
        %335 = vmatpush.msra.mxu0 %v257
        %336 = vmatpush.msra.mxu0 %v256
        %337 = vmatpush.msra.mxu0 %v255
        %338 = vmatpush.msra.mxu0 %v254
        %339 = vmatpush.msra.mxu0 %v253
        %340 = vmatpush.msra.mxu0 %v252
        %341 = vmatpush.msra.mxu0 %v251
        %342 = vmatpush.msra.mxu0 %v250
        %343 = vmatmul.f32.gmra.mxu0 %v324
        %v344 = vpop.f32.mrf.mxu0
        %v345 = vadd.f32 %v326, %v344
        %346 = vmatmul.f32.gmra.mxu0 %v325
        %v347 = vpop.f32.mrf.mxu0
        %v348 = vadd.f32 %v326, %v347
        %349 = vdwg.mxu0
        %v350 = vmax.f32 %v345, 0.0
        %v351 = vmax.f32 %v348, 0.0
        %v352 = vperm.slane %v266, 4
        %v353 = vmul.f32 %v350, %v352
        %v354 = vmul.f32 %v351, %v352
        %355 = vadd.xlane.f32.xlu0 %v353
        %v356 = vpop.xlane.xlu0 %355
        %357 = vadd.xlane.f32.xlu0 %v354
        %v358 = vpop.xlane.xlu0 %357
        %v359 = vperm.slane %v266, 5
        %v360 = vmul.f32 %v350, %v359
        %v361 = vmul.f32 %v351, %v359
        %362 = vadd.xlane.f32.xlu0 %v360
        %v363 = vpop.xlane.xlu0 %362
        %364 = vadd.xlane.f32.xlu0 %v361
        %v365 = vpop.xlane.xlu0 %364
        %v366 = vlaneseq
        %v367 = vand.u32 %v366, 127
        %vm368 = vcmp.eq.s32.totalorder %v367, 0
        %v369 = vsel %vm368, %v356, %v363
        %v370 = vsel %vm368, %v358, %v365
        %v371 = vperm.slane %v266, 3
        %v372 = vadd.f32 %v369, %v371
        %v373 = vadd.f32 %v370, %v371
        %vm374 = vcmask 15360
        %375 = vst.msk [vmem:[%s224] sm:$0xff] %vm374, %v372
        %376 = vst.msk [vmem:[%s224 + $0x8] sm:$0xff] %vm374, %v373
        %s377 = smul.u32 2, %s18
        %p378 = scmp.lt.s32.totalorder %s377, 3
        %s379 = scalar_select %p378, %s377, 3
        %s380 = smul.addr %s379, 8
        %s381 = scalar_lea.vmem %s3, %s380
        // Predicated region
        $region45: #{tpu_custom_call.1} parent=31 // pred_check
          %p382 = pneg %p104
        $region46: #{tpu_custom_call.1} parent=31 // pred_check_branch
          %384 = sbr.rel (%p382) target = $region48
        $region47: #{tpu_custom_call.1} parent=31 // pred_region
          %s385 = smul.u32 2, %s18
        $region48: #{tpu_custom_call.1} parent=31 // pred_fallthru
          _
      $region32: #{tpu_custom_call.1} parent=5 // pred_fallthru
        _
      %p386 = scmp.le.s32.totalorder 2, %s13
      // Predicated region
      $region49: #{tpu_custom_call.1} parent=5 // pred_check
        %p387 = pneg %p386
      $region50: #{tpu_custom_call.1} parent=5 // pred_check_branch
        %389 = sbr.rel (%p387) target = $region52
      $region51: #{tpu_custom_call.1} parent=5 // pred_region
        %s390 = ssub.s32 %s13, 2
        // Predicated region
        $region53: #{tpu_custom_call.1} parent=51 // pred_check
          %p391 = pneg %p110
        $region54: #{tpu_custom_call.1} parent=51 // pred_check_branch
          %393 = sbr.rel (%p391) target = $region56
        $region55: #{tpu_custom_call.1} parent=51 // pred_region
          %s394 = smul.u32 2, %s19
          %p395 = scmp.lt.s32.totalorder %s394, 3
          %s396 = scalar_select %p395, %s394, 3
          %s397 = smul.addr %s396, 8
          %s398 = scalar_lea.vmem %s3, %s397
        $region56: #{tpu_custom_call.1} parent=51 // pred_fallthru
          _
      $region52: #{tpu_custom_call.1} parent=5 // pred_fallthru
        _
    $region6: #{tpu_custom_call.1} parent=1 // loop_footer
      %s17 = sadd.s32 1, %s13
    $region7: #{tpu_custom_call.1} parent=1 // loop_footer_branch
      %12 = sbr.rel target = $region3
    $region8: #{tpu_custom_call.1} parent=1 // loop_exit
      _
    %399 = vsyncpa [#allocation3], 1
    %s400 = scalar_lea.sflag [#allocation3], 1
    %401 = vsyncpa %s400, 1
    %402 = vsyncpa [#allocation5], 1

</llo_original>
